<compile_context>
chip_gen: v5e
topology: v5e:2x2
jax: 0.10.0
libtpu: 0.0.40
codegen_flags: <defaults>
</compile_context>

<pallas_src>
import jax
import jax.numpy as jnp
from jax.experimental import pallas as pl
from jax.experimental.pallas import tpu as pltpu

HIDDEN = 256


def _round_up(x, m):
    return (x + m - 1) // m * m


def _choose_tile(batch, tm_cap):
    """Choose the batch-tile (lane) width.

    * batch <= 256: a single grid step covering the whole batch (block last dim
      == full array dim keeps the BlockSpec legal for any batch size).
    * larger batches: aim for >= 2 grid steps so the 'parallel' axis can shard
      over v7x's two TensorCores, with lane-aligned (multiple-of-256) tiles,
      capped at tm_cap to bound the per-step VMEM footprint.
    """
    if batch <= 256:
        return batch
    tm = _round_up(pl.cdiv(batch, 2), 256)
    return max(256, min(tm, _round_up(tm_cap, 256)))


def valuenet_kernel(xt_ref, w1t_ref, b1_ref, w2t_ref, b2_ref, w3_ref, b3_ref, o_ref):
    # One batch tile (tm lane-columns) per grid step.  Weights are
    # VMEM-resident (constant index_maps); only the state/output tiles move.
    xt = xt_ref[...].astype(jnp.bfloat16)                       # [S, tm]

    # Layer 1: [256, S] @ [S, tm]   (bf16 operands, f32 accumulation)
    h1 = jnp.dot(w1t_ref[...], xt,
                 preferred_element_type=jnp.float32) + b1_ref[...]
    h1 = jnp.maximum(h1, 0.0)                                   # [256, tm] f32

    # Layer 2: [256, 256] @ [256, tm]
    h2 = jnp.dot(w2t_ref[...], h1.astype(jnp.bfloat16),
                 preferred_element_type=jnp.float32) + b2_ref[...]
    h2 = jnp.maximum(h2, 0.0)                                   # [256, tm] f32

    # Layer 3 (out_features = 1): f32 VPU multiply + sublane reduction instead
    # of a 1/256-utilization MXU pass; result is a lane-dense [1, tm] row.
    out = jnp.sum(h2 * w3_ref[...], axis=0, keepdims=True) + b3_ref[0]
    o_ref[...] = out.astype(o_ref.dtype)


def prepare_params(params):
    """One-time conversion of f32 master params into the kernel layout
    (feature-major / transposed): bf16 matmul weights [out, in], column-vector
    f32 biases [256, 1], head weight as an f32 [256, 1] column and the head
    bias as a flat f32 SMEM scalar.  Do this once and keep it resident."""
    return {
        "w1t": params["w1"].T.astype(jnp.bfloat16),                 # [256, S]
        "b1c": params["b1"].reshape(HIDDEN, 1).astype(jnp.float32),
        "w2t": params["w2"].T.astype(jnp.bfloat16),                 # [256, 256]
        "b2c": params["b2"].reshape(HIDDEN, 1).astype(jnp.float32),
        "w3c": params["w3"].reshape(HIDDEN, 1).astype(jnp.float32),
        "b3": params["b3"].reshape(1).astype(jnp.float32),
    }


def value_net_forward(state, prep, *, tm_cap=2048):
    """Fused ValueNet forward.

    state : [B, state_dim] float32
    prep  : output of prepare_params()
    returns [B, 1] float32
    """
    B, S = state.shape
    tm = _choose_tile(B, tm_cap)
    grid_m = pl.cdiv(B, tm)

    # Feature-major layout: lanes carry the batch, so activations, the head
    # reduction and the output stores are all lane-dense.  Transposing the
    # [B, S] state is a tiny XLA op (it replaces the old jnp.pad copy).
    state_t = state.T                                            # [S, B]

    w1t, b1c = prep["w1t"], prep["b1c"]
    w2t, b2c = prep["w2t"], prep["b2c"]
    w3c, b3 = prep["w3c"], prep["b3"]

    # Weights/biases: full block, constant index -> fetched once, VMEM-resident.
    const = lambda a: pl.BlockSpec(a.shape, lambda i: (0,) * a.ndim)

    weight_bytes = sum(a.size * a.dtype.itemsize for a in (w1t, b1c, w2t, b2c, w3c))
    act_bytes = HIDDEN * tm * 4
    # Footprint-derived VMEM budget: (double-buffered) resident weights +
    # double-buffered state/output tiles + f32/bf16 activation temporaries +
    # headroom.  ~25 MiB at tm=2048 -> safe on v5e/v6e (128 MiB) and v7x (64 MiB).
    vmem_limit = int(2 * weight_bytes
                     + 2 * (S * tm * 4 + tm * 4)
                     + 8 * act_bytes
                     + (8 << 20))

    flops = 2 * B * (S * HIDDEN + HIDDEN * HIDDEN + HIDDEN)
    bytes_accessed = state.size * 4 + weight_bytes + 4 + B * 4

    out = pl.pallas_call(
        valuenet_kernel,
        out_shape=jax.ShapeDtypeStruct((grid_m, tm), jnp.float32),
        grid=(grid_m,),
        in_specs=[
            pl.BlockSpec((S, tm), lambda i: (0, i)),             # state tile (pipelined)
            const(w1t), const(b1c),                              # resident weights
            const(w2t), const(b2c),
            const(w3c),
            pl.BlockSpec(memory_space=pltpu.MemorySpace.SMEM),   # b3 scalar in SMEM
        ],
        out_specs=pl.BlockSpec((1, tm), lambda i: (i, 0)),       # lane-dense rows
        compiler_params=pltpu.CompilerParams(
            dimension_semantics=("parallel",),   # shards grid steps over v7x's 2 TCs
            vmem_limit_bytes=vmem_limit,
        ),
        cost_estimate=pl.CostEstimate(
            flops=flops, transcendentals=0, bytes_accessed=bytes_accessed),
    )(state_t, w1t, b1c, w2t, b2c, w3c, b3)

    # [grid_m, tm] lane-dense slab -> [B, 1] (tiny reshape + slice).
    return out.reshape(-1)[:B].reshape(B, 1)


def init_params(key, state_dim, edge=0.003):
    """Deterministic init mirroring PyTorch nn.Linear defaults
    (uniform(-1/sqrt(fan_in), 1/sqrt(fan_in))) and the uniform(-edge, edge)
    override for linear3.  Weights stored as [in, out] so the math reference
    computes x @ W + b (== PyTorch's x @ W.T + b)."""
    k = jax.random.split(key, 6)

    def lin(kw, kb, fan_in, fan_out, bound):
        w = jax.random.uniform(kw, (fan_in, fan_out), jnp.float32, -bound, bound)
        b = jax.random.uniform(kb, (1, fan_out), jnp.float32, -bound, bound)
        return w, b

    b1_bound = 1.0 / jnp.sqrt(float(state_dim))
    b2_bound = 1.0 / jnp.sqrt(float(HIDDEN))

    w1, b1 = lin(k[0], k[1], state_dim, HIDDEN, b1_bound)
    w2, b2 = lin(k[2], k[3], HIDDEN, HIDDEN, b2_bound)
    w3, b3 = lin(k[4], k[5], HIDDEN, 1, edge)

    return {"w1": w1, "b1": b1, "w2": w2, "b2": b2, "w3": w3, "b3": b3}


def value_net_ref_f32(state, params):
    """Pure-f32 JAX reference (PyTorch semantics)."""
    h1 = jnp.maximum(state @ params["w1"] + params["b1"], 0.0)
    h2 = jnp.maximum(h1 @ params["w2"] + params["b2"], 0.0)
    return h2 @ params["w3"] + params["b3"]


def value_net_ref_bf16(state, params):
    """Reference applying the same bf16 operand casts the kernel uses."""
    w1 = params["w1"].astype(jnp.bfloat16)
    w2 = params["w2"].astype(jnp.bfloat16)
    h1 = jnp.dot(state.astype(jnp.bfloat16), w1,
                 preferred_element_type=jnp.float32) + params["b1"]
    h1 = jnp.maximum(h1, 0.0)
    h2 = jnp.dot(h1.astype(jnp.bfloat16), w2,
                 preferred_element_type=jnp.float32) + params["b2"]
    h2 = jnp.maximum(h2, 0.0)
    return h2 @ params["w3"] + params["b3"]


if __name__ == "__main__":
    key = jax.random.PRNGKey(0)
    k_param, k_state = jax.random.split(key)

    batch = 8
    state_dim = 16

    params = init_params(k_param, state_dim)
    prep = prepare_params(params)
    state = jax.random.normal(k_state, (batch, state_dim), jnp.float32)

    out = jax.block_until_ready(value_net_forward(state, prep))
    assert out.shape == (batch, 1), out.shape

    # Tight check vs. a reference with the same bf16 operand casts, and a
    # looser check vs. the full-f32 PyTorch-semantics reference.
    ref_bf16 = value_net_ref_bf16(state, params)
    assert jnp.allclose(out, ref_bf16, atol=2e-3, rtol=2e-2), (out, ref_bf16)
    ref_f32 = value_net_ref_f32(state, params)
    assert jnp.allclose(out, ref_f32, atol=5e-3, rtol=5e-2), (out, ref_f32)

    # Exercise the multi-step grid (2 "parallel" steps) + ragged final tile.
    big_state = jax.random.normal(k_state, (1000, state_dim), jnp.float32)
    big_out = jax.block_until_ready(value_net_forward(big_state, prep))
    assert big_out.shape == (1000, 1), big_out.shape
    big_ref = value_net_ref_bf16(big_state, params)
    assert jnp.allclose(big_out, big_ref, atol=2e-3, rtol=2e-2)

    print("KERNEL_OK")
</pallas_src>

<mosaic_0001>
module attributes {stable_mosaic.version = 11 : i64} {
  func.func @valuenet_kernel(%arg0: i32, %arg1: memref<16x8xf32, #tpu.memory_space<vmem>>, %arg2: memref<256x16xbf16, #tpu.memory_space<vmem>>, %arg3: memref<256x1xf32, #tpu.memory_space<vmem>>, %arg4: memref<256x256xbf16, #tpu.memory_space<vmem>>, %arg5: memref<256x1xf32, #tpu.memory_space<vmem>>, %arg6: memref<256x1xf32, #tpu.memory_space<vmem>>, %arg7: memref<1xf32, #tpu.memory_space<smem>>, %arg8: memref<1x8xf32, #tpu.memory_space<vmem>>) attributes {dimension_semantics = [#tpu.dimension_semantics<parallel>], iteration_bounds = array<i64: 1>, scalar_prefetch = 0 : i64, scratch_operands = 0 : i64, tpu.core_type = #tpu.core_type<tc>, window_params = [{transform_indices = @transform_0, window_bounds = array<i64: 16, 8>}, {pipeline_mode = #tpu.pipeline_mode<synchronous>, transform_indices = @transform_1, window_bounds = array<i64: 256, 16>}, {pipeline_mode = #tpu.pipeline_mode<synchronous>, transform_indices = @transform_2, window_bounds = array<i64: 256, 1>}, {pipeline_mode = #tpu.pipeline_mode<synchronous>, transform_indices = @transform_3, window_bounds = array<i64: 256, 256>}, {pipeline_mode = #tpu.pipeline_mode<synchronous>, transform_indices = @transform_4, window_bounds = array<i64: 256, 1>}, {pipeline_mode = #tpu.pipeline_mode<synchronous>, transform_indices = @transform_5, window_bounds = array<i64: 256, 1>}, {transform_indices = @transform_6, window_bounds = array<i64: 1>}, {transform_indices = @transform_7, window_bounds = array<i64: 1, 8>}]} {
    %c0 = arith.constant 0 : index
    %c0_0 = arith.constant 0 : index
    %0 = vector.load %arg1[%c0, %c0_0] : memref<16x8xf32, #tpu.memory_space<vmem>>, vector<16x8xf32>
    %1 = arith.truncf %0 : vector<16x8xf32> to vector<16x8xbf16>
    %c0_1 = arith.constant 0 : index
    %c0_2 = arith.constant 0 : index
    %2 = vector.load %arg2[%c0_1, %c0_2] : memref<256x16xbf16, #tpu.memory_space<vmem>>, vector<256x16xbf16>
    %cst = arith.constant dense<0.000000e+00> : vector<256x8xf32>
    %3 = tpu.matmul %2, %1, %cst {dimension_numbers = #tpu.dot_dimension_numbers<[1], [0], [0], [1], [0, 0, 1, 1], [], []>} : vector<256x16xbf16>, vector<16x8xbf16>, vector<256x8xf32> -> vector<256x8xf32>
    %c0_3 = arith.constant 0 : index
    %c0_4 = arith.constant 0 : index
    %4 = vector.load %arg3[%c0_3, %c0_4] : memref<256x1xf32, #tpu.memory_space<vmem>>, vector<256x1xf32>
    %5 = vector.broadcast %4 : vector<256x1xf32> to vector<256x8xf32>
    %6 = arith.addf %3, %5 : vector<256x8xf32>
    %cst_5 = arith.constant 0.000000e+00 : f32
    %7 = vector.broadcast %cst_5 : f32 to vector<256x8xf32>
    %8 = arith.maximumf %6, %7 : vector<256x8xf32>
    %c0_6 = arith.constant 0 : index
    %c0_7 = arith.constant 0 : index
    %9 = vector.load %arg4[%c0_6, %c0_7] : memref<256x256xbf16, #tpu.memory_space<vmem>>, vector<256x256xbf16>
    %10 = arith.truncf %8 : vector<256x8xf32> to vector<256x8xbf16>
    %cst_8 = arith.constant dense<0.000000e+00> : vector<256x8xf32>
    %11 = tpu.matmul %9, %10, %cst_8 {dimension_numbers = #tpu.dot_dimension_numbers<[1], [0], [0], [1], [0, 0, 1, 1], [], []>} : vector<256x256xbf16>, vector<256x8xbf16>, vector<256x8xf32> -> vector<256x8xf32>
    %c0_9 = arith.constant 0 : index
    %c0_10 = arith.constant 0 : index
    %12 = vector.load %arg5[%c0_9, %c0_10] : memref<256x1xf32, #tpu.memory_space<vmem>>, vector<256x1xf32>
    %13 = vector.broadcast %12 : vector<256x1xf32> to vector<256x8xf32>
    %14 = arith.addf %11, %13 : vector<256x8xf32>
    %cst_11 = arith.constant 0.000000e+00 : f32
    %15 = vector.broadcast %cst_11 : f32 to vector<256x8xf32>
    %16 = arith.maximumf %14, %15 : vector<256x8xf32>
    %c0_12 = arith.constant 0 : index
    %c0_13 = arith.constant 0 : index
    %17 = vector.load %arg6[%c0_12, %c0_13] : memref<256x1xf32, #tpu.memory_space<vmem>>, vector<256x1xf32>
    %18 = vector.broadcast %17 : vector<256x1xf32> to vector<256x8xf32>
    %19 = arith.mulf %16, %18 : vector<256x8xf32>
    %cst_14 = arith.constant dense<0.000000e+00> : vector<8xf32>
    %20 = vector.multi_reduction <add>, %19, %cst_14 [0] : vector<256x8xf32> to vector<8xf32>
    %21 = vector.shape_cast %20 : vector<8xf32> to vector<1x8xf32>
    %c0_15 = arith.constant 0 : index
    %22 = memref.load %arg7[%c0_15] : memref<1xf32, #tpu.memory_space<smem>>
    %23 = vector.broadcast %22 : f32 to vector<1x8xf32>
    %24 = arith.addf %21, %23 : vector<1x8xf32>
    %c0_16 = arith.constant 0 : index
    %c0_17 = arith.constant 0 : index
    %25 = vector.load %arg8[%c0_16, %c0_17] : memref<1x8xf32, #tpu.memory_space<vmem>>, vector<1x8xf32>
    tpu.vector_store %arg8[%c0_16, %c0_17], %24 {strides = array<i32>} : memref<1x8xf32, #tpu.memory_space<vmem>>, vector<1x8xf32>,
    return
  }
  func.func @transform_0(%arg0: i32) -> (i32, i32) {
    %c0_i32 = arith.constant 0 : i32
    %c0_i32_0 = arith.constant 0 : i32
    return %c0_i32, %arg0 : i32, i32
  }
  func.func @transform_1(%arg0: i32) -> (i32, i32) {
    %c0_i32 = arith.constant 0 : i32
    %c0_i32_0 = arith.constant 0 : i32
    %c0_i32_1 = arith.constant 0 : i32
    return %c0_i32, %c0_i32_0 : i32, i32
  }
  func.func @transform_2(%arg0: i32) -> (i32, i32) {
    %c0_i32 = arith.constant 0 : i32
    %c0_i32_0 = arith.constant 0 : i32
    %c0_i32_1 = arith.constant 0 : i32
    return %c0_i32, %c0_i32_0 : i32, i32
  }
  func.func @transform_3(%arg0: i32) -> (i32, i32) {
    %c0_i32 = arith.constant 0 : i32
    %c0_i32_0 = arith.constant 0 : i32
    %c0_i32_1 = arith.constant 0 : i32
    return %c0_i32, %c0_i32_0 : i32, i32
  }
  func.func @transform_4(%arg0: i32) -> (i32, i32) {
    %c0_i32 = arith.constant 0 : i32
    %c0_i32_0 = arith.constant 0 : i32
    %c0_i32_1 = arith.constant 0 : i32
    return %c0_i32, %c0_i32_0 : i32, i32
  }
  func.func @transform_5(%arg0: i32) -> (i32, i32) {
    %c0_i32 = arith.constant 0 : i32
    %c0_i32_0 = arith.constant 0 : i32
    %c0_i32_1 = arith.constant 0 : i32
    return %c0_i32, %c0_i32_0 : i32, i32
  }
  func.func @transform_6(%arg0: i32) -> i32 {
    %c0_i32 = arith.constant 0 : i32
    %c0_i32_0 = arith.constant 0 : i32
    return %c0_i32 : i32
  }
  func.func @transform_7(%arg0: i32) -> (i32, i32) {
    %c0_i32 = arith.constant 0 : i32
    %c0_i32_0 = arith.constant 0 : i32
    return %arg0, %c0_i32 : i32, i32
  }
}

</mosaic_0001>

<llo_original>
// kernel: tpu_custom_call.1
$region0: #{tpu_custom_call.1}
  #allocation0 [shape = 'u32[]', space=smem, size = 0x4, offset = 0x4, fixed_abs, tag = 'smem constant byte address 0x4 - core index']
  #allocation1 [shape = 'u32[72,128]{1,0:T(1,128)}', space=vmem, size = 0x9000, scoped, tag = 'internal scratch']
  #allocation2 [shape = 'f32[1]{0:T(128)S(6)}', space=smem, size = 0x200, scoped, tag = 'scoped memory for tpu_custom_call.1']
  %s0 = inlined_call_operand.vmem [shape: f32[16,8], index: 0, kind: input, shape index: {}]
  %s1 = inlined_call_operand.vmem [shape: bf16[256,16], index: 1, kind: input, shape index: {}]
  %s2 = inlined_call_operand.vmem [shape: f32[256,1], index: 2, kind: input, shape index: {}]
  %s3 = inlined_call_operand.vmem [shape: bf16[256,256], index: 3, kind: input, shape index: {}]
  %s4 = inlined_call_operand.vmem [shape: f32[256,1], index: 4, kind: input, shape index: {}]
  %s5 = inlined_call_operand.vmem [shape: f32[256,1], index: 5, kind: input, shape index: {}]
  %s6 = inlined_call_operand.<no memory space> [shape: f32[1], index: 6, kind: input, shape index: {}]
  %s7 = inlined_call_operand.hbm [shape: f32[1,8], index: 7, kind: output, shape index: {}]
  %s8 = sld [smem:[#allocation0]]
  $region38: #{tpu_custom_call.1} parent=0
    _
  %s10 = ssub.s32 1, %s8
  %s11 = scalar_select 0, %s10, %s8
  %12 = sst [smem:[#allocation2]] %s6
  $region1: #{tpu_custom_call.1} parent=0
    #allocation3 [shape = 'u8[512]{0}', space=vmem, size = 0x400, scoped, tag = 'output window, operand 0, single buffered']
    #allocation4 [shape = 's32[1]{0}', space=sflag, size = 0x4, scoped, tag = 'scoped memory for tpu_custom_call.1']
    %13 = vsyncpa [#allocation4], 0
    // Predicated region
    $region2: #{tpu_custom_call.1} parent=1 // pred_check
      _
    $region3: #{tpu_custom_call.1} parent=1 // pred_check_branch
      %15 = sbr.rel (0) target = $region5
    $region4: #{tpu_custom_call.1} parent=1 // pred_region
      _
    $region5: #{tpu_custom_call.1} parent=1 // pred_fallthru
      _
    // Predicated region
    $region6: #{tpu_custom_call.1} parent=1 // pred_check
      _
    $region7: #{tpu_custom_call.1} parent=1 // pred_check_branch
      %17 = sbr.rel (0) target = $region9
    $region8: #{tpu_custom_call.1} parent=1 // pred_region
      _
    $region9: #{tpu_custom_call.1} parent=1 // pred_fallthru
      _
    // Predicated region
    $region10: #{tpu_custom_call.1} parent=1 // pred_check
      _
    $region11: #{tpu_custom_call.1} parent=1 // pred_check_branch
      %19 = sbr.rel (0) target = $region13
    $region12: #{tpu_custom_call.1} parent=1 // pred_region
      _
    $region13: #{tpu_custom_call.1} parent=1 // pred_fallthru
      _
    // Predicated region
    $region14: #{tpu_custom_call.1} parent=1 // pred_check
      _
    $region15: #{tpu_custom_call.1} parent=1 // pred_check_branch
      %21 = sbr.rel (0) target = $region17
    $region16: #{tpu_custom_call.1} parent=1 // pred_region
      _
    $region17: #{tpu_custom_call.1} parent=1 // pred_fallthru
      _
    // Predicated region
    $region18: #{tpu_custom_call.1} parent=1 // pred_check
      _
    $region19: #{tpu_custom_call.1} parent=1 // pred_check_branch
      %23 = sbr.rel (0) target = $region21
    $region20: #{tpu_custom_call.1} parent=1 // pred_region
      _
    $region21: #{tpu_custom_call.1} parent=1 // pred_fallthru
      _
    // Predicated region
    $region22: #{tpu_custom_call.1} parent=1 // pred_check
      _
    $region23: #{tpu_custom_call.1} parent=1 // pred_check_branch
      %25 = sbr.rel (0) target = $region25
    $region24: #{tpu_custom_call.1} parent=1 // pred_region
      _
    $region25: #{tpu_custom_call.1} parent=1 // pred_fallthru
      _
    // Predicated region
    $region26: #{tpu_custom_call.1} parent=1 // pred_check
      _
    $region27: #{tpu_custom_call.1} parent=1 // pred_check_branch
      %27 = sbr.rel (0) target = $region29
    $region28: #{tpu_custom_call.1} parent=1 // pred_region
      _
    $region29: #{tpu_custom_call.1} parent=1 // pred_fallthru
      _
    %v29 = vld [vmem:[%s0] sm:$0xff]
    %v30 = vld [vmem:[%s0 + $0x8] sm:$0xff]
    %v31 = vpack.c.bf16 %v30, %v29
    %v32 = vld [vmem:[%s1] sm:$0xf]
    %v33 = vld [vmem:[%s1 + $0x4] sm:$0xf]
    %v34 = vld [vmem:[%s1 + $0x8] sm:$0xf]
    %v35 = vld [vmem:[%s1 + $0xc] sm:$0xf]
    %v36 = vld [vmem:[%s1 + $0x10] sm:$0xf]
    %v37 = vld [vmem:[%s1 + $0x14] sm:$0xf]
    %v38 = vld [vmem:[%s1 + $0x18] sm:$0xf]
    %v39 = vld [vmem:[%s1 + $0x1c] sm:$0xf]
    %v40 = vld [vmem:[%s1 + $0x20] sm:$0xf]
    %v41 = vld [vmem:[%s1 + $0x24] sm:$0xf]
    %v42 = vld [vmem:[%s1 + $0x28] sm:$0xf]
    %v43 = vld [vmem:[%s1 + $0x2c] sm:$0xf]
    %v44 = vld [vmem:[%s1 + $0x30] sm:$0xf]
    %v45 = vld [vmem:[%s1 + $0x34] sm:$0xf]
    %v46 = vld [vmem:[%s1 + $0x38] sm:$0xf]
    %v47 = vld [vmem:[%s1 + $0x3c] sm:$0xf]
    %v48 = vld [vmem:[%s1 + $0x40] sm:$0xf]
    %v49 = vld [vmem:[%s1 + $0x44] sm:$0xf]
    %v50 = vld [vmem:[%s1 + $0x48] sm:$0xf]
    %v51 = vld [vmem:[%s1 + $0x4c] sm:$0xf]
    %v52 = vld [vmem:[%s1 + $0x50] sm:$0xf]
    %v53 = vld [vmem:[%s1 + $0x54] sm:$0xf]
    %v54 = vld [vmem:[%s1 + $0x58] sm:$0xf]
    %v55 = vld [vmem:[%s1 + $0x5c] sm:$0xf]
    %v56 = vld [vmem:[%s1 + $0x60] sm:$0xf]
    %v57 = vld [vmem:[%s1 + $0x64] sm:$0xf]
    %v58 = vld [vmem:[%s1 + $0x68] sm:$0xf]
    %v59 = vld [vmem:[%s1 + $0x6c] sm:$0xf]
    %v60 = vld [vmem:[%s1 + $0x70] sm:$0xf]
    %v61 = vld [vmem:[%s1 + $0x74] sm:$0xf]
    %v62 = vld [vmem:[%s1 + $0x78] sm:$0xf]
    %v63 = vld [vmem:[%s1 + $0x7c] sm:$0xf]
    %v64 = vld [vmem:[%s2] sm:$0xff]
    %v65 = vld [vmem:[%s2 + $0x8] sm:$0xff]
    %v66 = vld [vmem:[%s2 + $0x10] sm:$0xff]
    %v67 = vld [vmem:[%s2 + $0x18] sm:$0xff]
    %v68 = vld [vmem:[%s2 + $0x20] sm:$0xff]
    %v69 = vld [vmem:[%s2 + $0x28] sm:$0xff]
    %v70 = vld [vmem:[%s2 + $0x30] sm:$0xff]
    %v71 = vld [vmem:[%s2 + $0x38] sm:$0xff]
    %v72 = vld [vmem:[%s2 + $0x40] sm:$0xff]
    %v73 = vld [vmem:[%s2 + $0x48] sm:$0xff]
    %v74 = vld [vmem:[%s2 + $0x50] sm:$0xff]
    %v75 = vld [vmem:[%s2 + $0x58] sm:$0xff]
    %v76 = vld [vmem:[%s2 + $0x60] sm:$0xff]
    %v77 = vld [vmem:[%s2 + $0x68] sm:$0xff]
    %v78 = vld [vmem:[%s2 + $0x70] sm:$0xff]
    %v79 = vld [vmem:[%s2 + $0x78] sm:$0xff]
    %v80 = vld [vmem:[%s2 + $0x80] sm:$0xff]
    %v81 = vld [vmem:[%s2 + $0x88] sm:$0xff]
    %v82 = vld [vmem:[%s2 + $0x90] sm:$0xff]
    %v83 = vld [vmem:[%s2 + $0x98] sm:$0xff]
    %v84 = vld [vmem:[%s2 + $0xa0] sm:$0xff]
    %v85 = vld [vmem:[%s2 + $0xa8] sm:$0xff]
    %v86 = vld [vmem:[%s2 + $0xb0] sm:$0xff]
    %v87 = vld [vmem:[%s2 + $0xb8] sm:$0xff]
    %v88 = vld [vmem:[%s2 + $0xc0] sm:$0xff]
    %v89 = vld [vmem:[%s2 + $0xc8] sm:$0xff]
    %v90 = vld [vmem:[%s2 + $0xd0] sm:$0xff]
    %v91 = vld [vmem:[%s2 + $0xd8] sm:$0xff]
    %v92 = vld [vmem:[%s2 + $0xe0] sm:$0xff]
    %v93 = vld [vmem:[%s2 + $0xe8] sm:$0xff]
    %v94 = vld [vmem:[%s2 + $0xf0] sm:$0xff]
    %v95 = vld [vmem:[%s2 + $0xf8] sm:$0xff]
    %97 = vset.pattern.permute.xlu0 0
    %98 = vperm.xlu0 %97, %v64
    %v99 = vpop.permute.xlu0 %98
    %102 = vset.pattern.permute.xlu0 0
    %103 = vperm.xlu0 %102, %v65
    %v104 = vpop.permute.xlu0 %103
    %107 = vset.pattern.permute.xlu0 0
    %108 = vperm.xlu0 %107, %v66
    %v109 = vpop.permute.xlu0 %108
    %112 = vset.pattern.permute.xlu0 0
    %113 = vperm.xlu0 %112, %v67
    %v114 = vpop.permute.xlu0 %113
    %117 = vset.pattern.permute.xlu0 0
    %118 = vperm.xlu0 %117, %v68
    %v119 = vpop.permute.xlu0 %118
    %122 = vset.pattern.permute.xlu0 0
    %123 = vperm.xlu0 %122, %v69
    %v124 = vpop.permute.xlu0 %123
    %127 = vset.pattern.permute.xlu0 0
    %128 = vperm.xlu0 %127, %v70
    %v129 = vpop.permute.xlu0 %128
    %132 = vset.pattern.permute.xlu0 0
    %133 = vperm.xlu0 %132, %v71
    %v134 = vpop.permute.xlu0 %133
    %137 = vset.pattern.permute.xlu0 0
    %138 = vperm.xlu0 %137, %v72
    %v139 = vpop.permute.xlu0 %138
    %142 = vset.pattern.permute.xlu0 0
    %143 = vperm.xlu0 %142, %v73
    %v144 = vpop.permute.xlu0 %143
    %147 = vset.pattern.permute.xlu0 0
    %148 = vperm.xlu0 %147, %v74
    %v149 = vpop.permute.xlu0 %148
    %152 = vset.pattern.permute.xlu0 0
    %153 = vperm.xlu0 %152, %v75
    %v154 = vpop.permute.xlu0 %153
    %157 = vset.pattern.permute.xlu0 0
    %158 = vperm.xlu0 %157, %v76
    %v159 = vpop.permute.xlu0 %158
    %162 = vset.pattern.permute.xlu0 0
    %163 = vperm.xlu0 %162, %v77
    %v164 = vpop.permute.xlu0 %163
    %167 = vset.pattern.permute.xlu0 0
    %168 = vperm.xlu0 %167, %v78
    %v169 = vpop.permute.xlu0 %168
    %172 = vset.pattern.permute.xlu0 0
    %173 = vperm.xlu0 %172, %v79
    %v174 = vpop.permute.xlu0 %173
    %177 = vset.pattern.permute.xlu0 0
    %178 = vperm.xlu0 %177, %v80
    %v179 = vpop.permute.xlu0 %178
    %182 = vset.pattern.permute.xlu0 0
    %183 = vperm.xlu0 %182, %v81
    %v184 = vpop.permute.xlu0 %183
    %187 = vset.pattern.permute.xlu0 0
    %188 = vperm.xlu0 %187, %v82
    %v189 = vpop.permute.xlu0 %188
    %192 = vset.pattern.permute.xlu0 0
    %193 = vperm.xlu0 %192, %v83
    %v194 = vpop.permute.xlu0 %193
    %197 = vset.pattern.permute.xlu0 0
    %198 = vperm.xlu0 %197, %v84
    %v199 = vpop.permute.xlu0 %198
    %202 = vset.pattern.permute.xlu0 0
    %203 = vperm.xlu0 %202, %v85
    %v204 = vpop.permute.xlu0 %203
    %207 = vset.pattern.permute.xlu0 0
    %208 = vperm.xlu0 %207, %v86
    %v209 = vpop.permute.xlu0 %208
    %212 = vset.pattern.permute.xlu0 0
    %213 = vperm.xlu0 %212, %v87
    %v214 = vpop.permute.xlu0 %213
    %217 = vset.pattern.permute.xlu0 0
    %218 = vperm.xlu0 %217, %v88
    %v219 = vpop.permute.xlu0 %218
    %222 = vset.pattern.permute.xlu0 0
    %223 = vperm.xlu0 %222, %v89
    %v224 = vpop.permute.xlu0 %223
    %227 = vset.pattern.permute.xlu0 0
    %228 = vperm.xlu0 %227, %v90
    %v229 = vpop.permute.xlu0 %228
    %232 = vset.pattern.permute.xlu0 0
    %233 = vperm.xlu0 %232, %v91
    %v234 = vpop.permute.xlu0 %233
    %237 = vset.pattern.permute.xlu0 0
    %238 = vperm.xlu0 %237, %v92
    %v239 = vpop.permute.xlu0 %238
    %242 = vset.pattern.permute.xlu0 0
    %243 = vperm.xlu0 %242, %v93
    %v244 = vpop.permute.xlu0 %243
    %247 = vset.pattern.permute.xlu0 0
    %248 = vperm.xlu0 %247, %v94
    %v249 = vpop.permute.xlu0 %248
    %252 = vset.pattern.permute.xlu0 0
    %253 = vperm.xlu0 %252, %v95
    %v254 = vpop.permute.xlu0 %253
    %v288 = vunpack.c.l.b16 %v32
    %v289 = vunpack.c.l.b16 %v33
    %v290 = vunpack.c.l.b16 %v34
    %v291 = vunpack.c.l.b16 %v35
    %v292 = vunpack.c.l.b16 %v36
    %v293 = vunpack.c.l.b16 %v37
    %v294 = vunpack.c.l.b16 %v38
    %v295 = vunpack.c.l.b16 %v39
    %v296 = vunpack.c.l.b16 %v40
    %v297 = vunpack.c.l.b16 %v41
    %v298 = vunpack.c.l.b16 %v42
    %v299 = vunpack.c.l.b16 %v43
    %v300 = vunpack.c.l.b16 %v44
    %v301 = vunpack.c.l.b16 %v45
    %v302 = vunpack.c.l.b16 %v46
    %v303 = vunpack.c.l.b16 %v47
    %v304 = vunpack.c.l.b16 %v48
    %v305 = vunpack.c.l.b16 %v49
    %v306 = vunpack.c.l.b16 %v50
    %v307 = vunpack.c.l.b16 %v51
    %v308 = vunpack.c.l.b16 %v52
    %v309 = vunpack.c.l.b16 %v53
    %v310 = vunpack.c.l.b16 %v54
    %v311 = vunpack.c.l.b16 %v55
    %v312 = vunpack.c.l.b16 %v56
    %v313 = vunpack.c.l.b16 %v57
    %v314 = vunpack.c.l.b16 %v58
    %v315 = vunpack.c.l.b16 %v59
    %v316 = vunpack.c.l.b16 %v60
    %v317 = vunpack.c.l.b16 %v61
    %v318 = vunpack.c.l.b16 %v62
    %v319 = vunpack.c.l.b16 %v63
    %v320 = vpack.c.b16 %v289, %v288
    %v321 = vpack.c.b16 %v291, %v290
    %v322 = vpack.c.b16 %v293, %v292
    %v323 = vpack.c.b16 %v295, %v294
    %v324 = vpack.c.b16 %v297, %v296
    %v325 = vpack.c.b16 %v299, %v298
    %v326 = vpack.c.b16 %v301, %v300
    %v327 = vpack.c.b16 %v303, %v302
    %v328 = vpack.c.b16 %v305, %v304
    %v329 = vpack.c.b16 %v307, %v306
    %v330 = vpack.c.b16 %v309, %v308
    %v331 = vpack.c.b16 %v311, %v310
    %v332 = vpack.c.b16 %v313, %v312
    %v333 = vpack.c.b16 %v315, %v314
    %v334 = vpack.c.b16 %v317, %v316
    %v335 = vpack.c.b16 %v319, %v318
    %vm336 = vcmask 130048
    %v338 = vsel %vm336, %v320, 0
    %v341 = vsel %vm336, %v321, 0
    %v344 = vsel %vm336, %v322, 0
    %v347 = vsel %vm336, %v323, 0
    %v350 = vsel %vm336, %v324, 0
    %v353 = vsel %vm336, %v325, 0
    %v356 = vsel %vm336, %v326, 0
    %v359 = vsel %vm336, %v327, 0
    %v362 = vsel %vm336, %v328, 0
    %v365 = vsel %vm336, %v329, 0
    %v368 = vsel %vm336, %v330, 0
    %v371 = vsel %vm336, %v331, 0
    %v374 = vsel %vm336, %v332, 0
    %v377 = vsel %vm336, %v333, 0
    %v380 = vsel %vm336, %v334, 0
    %v383 = vsel %vm336, %v335, 0
    %385 = vmatpush.bf16.msra.mxu0 0
    %386 = vmatpush.bf16.msra.mxu0 0
    %387 = vmatpush.bf16.msra.mxu0 0
    %388 = vmatpush.bf16.msra.mxu0 0
    %389 = vmatpush.bf16.msra.mxu0 0
    %390 = vmatpush.bf16.msra.mxu0 0
    %391 = vmatpush.bf16.msra.mxu0 0
    %392 = vmatpush.bf16.msra.mxu0 %v31
    %393 = vmatmul.bf16.gmra.mxu0 %v338
    %v394 = vpop.f32.mrf.mxu0
    %v395 = vadd.f32 %v99, %v394
    %v396 = vpop.f32.mrf.mxu0
    %v397 = vadd.f32 %v104, %v396
    %398 = vmatmul.bf16.gmra.mxu0 %v341
    %v399 = vpop.f32.mrf.mxu0
    %v400 = vadd.f32 %v109, %v399
    %v401 = vpop.f32.mrf.mxu0
    %v402 = vadd.f32 %v114, %v401
    %403 = vmatmul.bf16.gmra.mxu0 %v344
    %v404 = vpop.f32.mrf.mxu0
    %v405 = vadd.f32 %v119, %v404
    %v406 = vpop.f32.mrf.mxu0
    %v407 = vadd.f32 %v124, %v406
    %408 = vmatmul.bf16.gmra.mxu0 %v347
    %v409 = vpop.f32.mrf.mxu0
    %v410 = vadd.f32 %v129, %v409
    %v411 = vpop.f32.mrf.mxu0
    %v412 = vadd.f32 %v134, %v411
    %413 = vmatmul.bf16.gmra.mxu0 %v350
    %v414 = vpop.f32.mrf.mxu0
    %v415 = vadd.f32 %v139, %v414
    %v416 = vpop.f32.mrf.mxu0
    %v417 = vadd.f32 %v144, %v416
    %418 = vmatmul.bf16.gmra.mxu0 %v353
    %v419 = vpop.f32.mrf.mxu0
    %v420 = vadd.f32 %v149, %v419
    %v421 = vpop.f32.mrf.mxu0
    %v422 = vadd.f32 %v154, %v421
    %423 = vmatmul.bf16.gmra.mxu0 %v356
    %v424 = vpop.f32.mrf.mxu0
    %v425 = vadd.f32 %v159, %v424
    %v426 = vpop.f32.mrf.mxu0
    %v427 = vadd.f32 %v164, %v426
    %428 = vmatmul.bf16.gmra.mxu0 %v359
    %v429 = vpop.f32.mrf.mxu0
    %v430 = vadd.f32 %v169, %v429
    %v431 = vpop.f32.mrf.mxu0
    %v432 = vadd.f32 %v174, %v431
    %433 = vmatmul.bf16.gmra.mxu0 %v362
    %v434 = vpop.f32.mrf.mxu0
    %v435 = vadd.f32 %v179, %v434
    %v436 = vpop.f32.mrf.mxu0
    %v437 = vadd.f32 %v184, %v436
    %438 = vmatmul.bf16.gmra.mxu0 %v365
    %v439 = vpop.f32.mrf.mxu0
    %v440 = vadd.f32 %v189, %v439
    %v441 = vpop.f32.mrf.mxu0
    %v442 = vadd.f32 %v194, %v441
    %443 = vmatmul.bf16.gmra.mxu0 %v368
    %v444 = vpop.f32.mrf.mxu0
    %v445 = vadd.f32 %v199, %v444
    %v446 = vpop.f32.mrf.mxu0
    %v447 = vadd.f32 %v204, %v446
    %448 = vmatmul.bf16.gmra.mxu0 %v371
    %v449 = vpop.f32.mrf.mxu0
    %v450 = vadd.f32 %v209, %v449
    %v451 = vpop.f32.mrf.mxu0
    %v452 = vadd.f32 %v214, %v451
    %453 = vmatmul.bf16.gmra.mxu0 %v374
    %v454 = vpop.f32.mrf.mxu0
    %v455 = vadd.f32 %v219, %v454
    %v456 = vpop.f32.mrf.mxu0
    %v457 = vadd.f32 %v224, %v456
    %458 = vmatmul.bf16.gmra.mxu0 %v377
    %v459 = vpop.f32.mrf.mxu0
    %v460 = vadd.f32 %v229, %v459
    %v461 = vpop.f32.mrf.mxu0
    %v462 = vadd.f32 %v234, %v461
    %463 = vmatmul.bf16.gmra.mxu0 %v380
    %v464 = vpop.f32.mrf.mxu0
    %v465 = vadd.f32 %v239, %v464
    %v466 = vpop.f32.mrf.mxu0
    %v467 = vadd.f32 %v244, %v466
    %468 = vmatmul.bf16.gmra.mxu0 %v383
    %v469 = vpop.f32.mrf.mxu0
    %v470 = vadd.f32 %v249, %v469
    %v471 = vpop.f32.mrf.mxu0
    %v472 = vadd.f32 %v254, %v471
    %473 = vdwg.mxu0
    %v474 = vmax.f32 %v395, 0.0
    %v475 = vmax.f32 %v397, 0.0
    %v476 = vmax.f32 %v400, 0.0
    %v477 = vmax.f32 %v402, 0.0
    %v478 = vmax.f32 %v405, 0.0
    %v479 = vmax.f32 %v407, 0.0
    %v480 = vmax.f32 %v410, 0.0
    %v481 = vmax.f32 %v412, 0.0
    %v482 = vmax.f32 %v415, 0.0
    %v483 = vmax.f32 %v417, 0.0
    %v484 = vmax.f32 %v420, 0.0
    %v485 = vmax.f32 %v422, 0.0
    %v486 = vmax.f32 %v425, 0.0
    %v487 = vmax.f32 %v427, 0.0
    %v488 = vmax.f32 %v430, 0.0
    %v489 = vmax.f32 %v432, 0.0
    %v490 = vmax.f32 %v435, 0.0
    %v491 = vmax.f32 %v437, 0.0
    %v492 = vmax.f32 %v440, 0.0
    %v493 = vmax.f32 %v442, 0.0
    %v494 = vmax.f32 %v445, 0.0
    %v495 = vmax.f32 %v447, 0.0
    %v496 = vmax.f32 %v450, 0.0
    %v497 = vmax.f32 %v452, 0.0
    %v498 = vmax.f32 %v455, 0.0
    %v499 = vmax.f32 %v457, 0.0
    %v500 = vmax.f32 %v460, 0.0
    %v501 = vmax.f32 %v462, 0.0
    %v502 = vmax.f32 %v465, 0.0
    %v503 = vmax.f32 %v467, 0.0
    %v504 = vmax.f32 %v470, 0.0
    %v505 = vmax.f32 %v472, 0.0
    %v506 = vld [vmem:[%s3] sm:$0xff]
    %v507 = vld [vmem:[%s3 + $0x8] sm:$0xff]
    %v508 = vld [vmem:[%s3 + $0x10] sm:$0xff]
    %v509 = vld [vmem:[%s3 + $0x18] sm:$0xff]
    %v510 = vld [vmem:[%s3 + $0x20] sm:$0xff]
    %v511 = vld [vmem:[%s3 + $0x28] sm:$0xff]
    %v512 = vld [vmem:[%s3 + $0x30] sm:$0xff]
    %v513 = vld [vmem:[%s3 + $0x38] sm:$0xff]
    %v514 = vld [vmem:[%s3 + $0x40] sm:$0xff]
    %v515 = vld [vmem:[%s3 + $0x48] sm:$0xff]
    %v516 = vld [vmem:[%s3 + $0x50] sm:$0xff]
    %v517 = vld [vmem:[%s3 + $0x58] sm:$0xff]
    %v518 = vld [vmem:[%s3 + $0x60] sm:$0xff]
    %v519 = vld [vmem:[%s3 + $0x68] sm:$0xff]
    %v520 = vld [vmem:[%s3 + $0x70] sm:$0xff]
    %v521 = vld [vmem:[%s3 + $0x78] sm:$0xff]
    %v522 = vld [vmem:[%s3 + $0x80] sm:$0xff]
    %v523 = vld [vmem:[%s3 + $0x88] sm:$0xff]
    %v524 = vld [vmem:[%s3 + $0x90] sm:$0xff]
    %v525 = vld [vmem:[%s3 + $0x98] sm:$0xff]
    %v526 = vld [vmem:[%s3 + $0xa0] sm:$0xff]
    %v527 = vld [vmem:[%s3 + $0xa8] sm:$0xff]
    %v528 = vld [vmem:[%s3 + $0xb0] sm:$0xff]
    %v529 = vld [vmem:[%s3 + $0xb8] sm:$0xff]
    %v530 = vld [vmem:[%s3 + $0xc0] sm:$0xff]
    %v531 = vld [vmem:[%s3 + $0xc8] sm:$0xff]
    %v532 = vld [vmem:[%s3 + $0xd0] sm:$0xff]
    %v533 = vld [vmem:[%s3 + $0xd8] sm:$0xff]
    %v534 = vld [vmem:[%s3 + $0xe0] sm:$0xff]
    %v535 = vld [vmem:[%s3 + $0xe8] sm:$0xff]
    %v536 = vld [vmem:[%s3 + $0xf0] sm:$0xff]
    %v537 = vld [vmem:[%s3 + $0xf8] sm:$0xff]
    %v538 = vpack.c.bf16 %v475, %v474
    %v539 = vpack.c.bf16 %v477, %v476
    %v540 = vpack.c.bf16 %v479, %v478
    %v541 = vpack.c.bf16 %v481, %v480
    %v542 = vpack.c.bf16 %v483, %v482
    %v543 = vpack.c.bf16 %v485, %v484
    %v544 = vpack.c.bf16 %v487, %v486
    %v545 = vpack.c.bf16 %v489, %v488
    %v546 = vpack.c.bf16 %v491, %v490
    %v547 = vpack.c.bf16 %v493, %v492
    %v548 = vpack.c.bf16 %v495, %v494
    %v549 = vpack.c.bf16 %v497, %v496
    %v550 = vpack.c.bf16 %v499, %v498
    %v551 = vpack.c.bf16 %v501, %v500
    %v552 = vpack.c.bf16 %v503, %v502
    %v553 = vpack.c.bf16 %v505, %v504
    %v554 = vld [vmem:[%s4] sm:$0xff]
    %v555 = vld [vmem:[%s4 + $0x8] sm:$0xff]
    %v556 = vld [vmem:[%s4 + $0x10] sm:$0xff]
    %v557 = vld [vmem:[%s4 + $0x18] sm:$0xff]
    %v558 = vld [vmem:[%s4 + $0x20] sm:$0xff]
    %v559 = vld [vmem:[%s4 + $0x28] sm:$0xff]
    %v560 = vld [vmem:[%s4 + $0x30] sm:$0xff]
    %v561 = vld [vmem:[%s4 + $0x38] sm:$0xff]
    %v562 = vld [vmem:[%s4 + $0x40] sm:$0xff]
    %v563 = vld [vmem:[%s4 + $0x48] sm:$0xff]
    %v564 = vld [vmem:[%s4 + $0x50] sm:$0xff]
    %v565 = vld [vmem:[%s4 + $0x58] sm:$0xff]
    %v566 = vld [vmem:[%s4 + $0x60] sm:$0xff]
    %v567 = vld [vmem:[%s4 + $0x68] sm:$0xff]
    %v568 = vld [vmem:[%s4 + $0x70] sm:$0xff]
    %v569 = vld [vmem:[%s4 + $0x78] sm:$0xff]
    %v570 = vld [vmem:[%s4 + $0x80] sm:$0xff]
    %v571 = vld [vmem:[%s4 + $0x88] sm:$0xff]
    %v572 = vld [vmem:[%s4 + $0x90] sm:$0xff]
    %v573 = vld [vmem:[%s4 + $0x98] sm:$0xff]
    %v574 = vld [vmem:[%s4 + $0xa0] sm:$0xff]
    %v575 = vld [vmem:[%s4 + $0xa8] sm:$0xff]
    %v576 = vld [vmem:[%s4 + $0xb0] sm:$0xff]
    %v577 = vld [vmem:[%s4 + $0xb8] sm:$0xff]
    %v578 = vld [vmem:[%s4 + $0xc0] sm:$0xff]
    %v579 = vld [vmem:[%s4 + $0xc8] sm:$0xff]
    %v580 = vld [vmem:[%s4 + $0xd0] sm:$0xff]
    %v581 = vld [vmem:[%s4 + $0xd8] sm:$0xff]
    %v582 = vld [vmem:[%s4 + $0xe0] sm:$0xff]
    %v583 = vld [vmem:[%s4 + $0xe8] sm:$0xff]
    %v584 = vld [vmem:[%s4 + $0xf0] sm:$0xff]
    %v585 = vld [vmem:[%s4 + $0xf8] sm:$0xff]
    %587 = vset.pattern.permute.xlu0 0
    %588 = vperm.xlu0 %587, %v554
    %v589 = vpop.permute.xlu0 %588
    %592 = vset.pattern.permute.xlu0 0
    %593 = vperm.xlu0 %592, %v555
    %v594 = vpop.permute.xlu0 %593
    %597 = vset.pattern.permute.xlu0 0
    %598 = vperm.xlu0 %597, %v556
    %v599 = vpop.permute.xlu0 %598
    %602 = vset.pattern.permute.xlu0 0
    %603 = vperm.xlu0 %602, %v557
    %v604 = vpop.permute.xlu0 %603
    %607 = vset.pattern.permute.xlu0 0
    %608 = vperm.xlu0 %607, %v558
    %v609 = vpop.permute.xlu0 %608
    %612 = vset.pattern.permute.xlu0 0
    %613 = vperm.xlu0 %612, %v559
    %v614 = vpop.permute.xlu0 %613
    %617 = vset.pattern.permute.xlu0 0
    %618 = vperm.xlu0 %617, %v560
    %v619 = vpop.permute.xlu0 %618
    %622 = vset.pattern.permute.xlu0 0
    %623 = vperm.xlu0 %622, %v561
    %v624 = vpop.permute.xlu0 %623
    %627 = vset.pattern.permute.xlu0 0
    %628 = vperm.xlu0 %627, %v562
    %v629 = vpop.permute.xlu0 %628
    %632 = vset.pattern.permute.xlu0 0
    %633 = vperm.xlu0 %632, %v563
    %v634 = vpop.permute.xlu0 %633
    %637 = vset.pattern.permute.xlu0 0
    %638 = vperm.xlu0 %637, %v564
    %v639 = vpop.permute.xlu0 %638
    %642 = vset.pattern.permute.xlu0 0
    %643 = vperm.xlu0 %642, %v565
    %v644 = vpop.permute.xlu0 %643
    %647 = vset.pattern.permute.xlu0 0
    %648 = vperm.xlu0 %647, %v566
    %v649 = vpop.permute.xlu0 %648
    %652 = vset.pattern.permute.xlu0 0
    %653 = vperm.xlu0 %652, %v567
    %v654 = vpop.permute.xlu0 %653
    %657 = vset.pattern.permute.xlu0 0
    %658 = vperm.xlu0 %657, %v568
    %v659 = vpop.permute.xlu0 %658
    %662 = vset.pattern.permute.xlu0 0
    %663 = vperm.xlu0 %662, %v569
    %v664 = vpop.permute.xlu0 %663
    %667 = vset.pattern.permute.xlu0 0
    %668 = vperm.xlu0 %667, %v570
    %v669 = vpop.permute.xlu0 %668
    %672 = vset.pattern.permute.xlu0 0
    %673 = vperm.xlu0 %672, %v571
    %v674 = vpop.permute.xlu0 %673
    %677 = vset.pattern.permute.xlu0 0
    %678 = vperm.xlu0 %677, %v572
    %v679 = vpop.permute.xlu0 %678
    %682 = vset.pattern.permute.xlu0 0
    %683 = vperm.xlu0 %682, %v573
    %v684 = vpop.permute.xlu0 %683
    %687 = vset.pattern.permute.xlu0 0
    %688 = vperm.xlu0 %687, %v574
    %v689 = vpop.permute.xlu0 %688
    %692 = vset.pattern.permute.xlu0 0
    %693 = vperm.xlu0 %692, %v575
    %v694 = vpop.permute.xlu0 %693
    %697 = vset.pattern.permute.xlu0 0
    %698 = vperm.xlu0 %697, %v576
    %v699 = vpop.permute.xlu0 %698
    %702 = vset.pattern.permute.xlu0 0
    %703 = vperm.xlu0 %702, %v577
    %v704 = vpop.permute.xlu0 %703
    %707 = vset.pattern.permute.xlu0 0
    %708 = vperm.xlu0 %707, %v578
    %v709 = vpop.permute.xlu0 %708
    %712 = vset.pattern.permute.xlu0 0
    %713 = vperm.xlu0 %712, %v579
    %v714 = vpop.permute.xlu0 %713
    %717 = vset.pattern.permute.xlu0 0
    %718 = vperm.xlu0 %717, %v580
    %v719 = vpop.permute.xlu0 %718
    %722 = vset.pattern.permute.xlu0 0
    %723 = vperm.xlu0 %722, %v581
    %v724 = vpop.permute.xlu0 %723
    %727 = vset.pattern.permute.xlu0 0
    %728 = vperm.xlu0 %727, %v582
    %v729 = vpop.permute.xlu0 %728
    %732 = vset.pattern.permute.xlu0 0
    %733 = vperm.xlu0 %732, %v583
    %v734 = vpop.permute.xlu0 %733
    %737 = vset.pattern.permute.xlu0 0
    %738 = vperm.xlu0 %737, %v584
    %v739 = vpop.permute.xlu0 %738
    %742 = vset.pattern.permute.xlu0 0
    %743 = vperm.xlu0 %742, %v585
    %v744 = vpop.permute.xlu0 %743
    %v778 = vunpack.c.l.b16 %v506
    %v779 = vunpack.c.h.b16 %v506
    %v780 = vunpack.c.l.b16 %v507
    %v781 = vunpack.c.h.b16 %v507
    %v782 = vunpack.c.l.b16 %v508
    %v783 = vunpack.c.h.b16 %v508
    %v784 = vunpack.c.l.b16 %v509
    %v785 = vunpack.c.h.b16 %v509
    %v786 = vunpack.c.l.b16 %v510
    %v787 = vunpack.c.h.b16 %v510
    %v788 = vunpack.c.l.b16 %v511
    %v789 = vunpack.c.h.b16 %v511
    %v790 = vunpack.c.l.b16 %v512
    %v791 = vunpack.c.h.b16 %v512
    %v792 = vunpack.c.l.b16 %v513
    %v793 = vunpack.c.h.b16 %v513
    %v794 = vunpack.c.l.b16 %v514
    %v795 = vunpack.c.h.b16 %v514
    %v796 = vunpack.c.l.b16 %v515
    %v797 = vunpack.c.h.b16 %v515
    %v798 = vunpack.c.l.b16 %v516
    %v799 = vunpack.c.h.b16 %v516
    %v800 = vunpack.c.l.b16 %v517
    %v801 = vunpack.c.h.b16 %v517
    %v802 = vunpack.c.l.b16 %v518
    %v803 = vunpack.c.h.b16 %v518
    %v804 = vunpack.c.l.b16 %v519
    %v805 = vunpack.c.h.b16 %v519
    %v806 = vunpack.c.l.b16 %v520
    %v807 = vunpack.c.h.b16 %v520
    %v808 = vunpack.c.l.b16 %v521
    %v809 = vunpack.c.h.b16 %v521
    %v810 = vunpack.c.l.b16 %v522
    %v811 = vunpack.c.h.b16 %v522
    %v812 = vunpack.c.l.b16 %v523
    %v813 = vunpack.c.h.b16 %v523
    %v814 = vunpack.c.l.b16 %v524
    %v815 = vunpack.c.h.b16 %v524
    %v816 = vunpack.c.l.b16 %v525
    %v817 = vunpack.c.h.b16 %v525
    %v818 = vunpack.c.l.b16 %v526
    %v819 = vunpack.c.h.b16 %v526
    %v820 = vunpack.c.l.b16 %v527
    %v821 = vunpack.c.h.b16 %v527
    %v822 = vunpack.c.l.b16 %v528
    %v823 = vunpack.c.h.b16 %v528
    %v824 = vunpack.c.l.b16 %v529
    %v825 = vunpack.c.h.b16 %v529
    %v826 = vunpack.c.l.b16 %v530
    %v827 = vunpack.c.h.b16 %v530
    %v828 = vunpack.c.l.b16 %v531
    %v829 = vunpack.c.h.b16 %v531
    %v830 = vunpack.c.l.b16 %v532
    %v831 = vunpack.c.h.b16 %v532
    %v832 = vunpack.c.l.b16 %v533
    %v833 = vunpack.c.h.b16 %v533
    %v834 = vunpack.c.l.b16 %v534
    %v835 = vunpack.c.h.b16 %v534
    %v836 = vunpack.c.l.b16 %v535
    %v837 = vunpack.c.h.b16 %v535
    %v838 = vunpack.c.l.b16 %v536
    %v839 = vunpack.c.h.b16 %v536
    %v840 = vunpack.c.l.b16 %v537
    %v841 = vunpack.c.h.b16 %v537
    %v842 = vpack.c.b16 %v780, %v778
    %v843 = vpack.c.b16 %v781, %v779
    %v844 = vpack.c.b16 %v784, %v782
    %v845 = vpack.c.b16 %v785, %v783
    %v846 = vpack.c.b16 %v788, %v786
    %v847 = vpack.c.b16 %v789, %v787
    %v848 = vpack.c.b16 %v792, %v790
    %v849 = vpack.c.b16 %v793, %v791
    %v850 = vpack.c.b16 %v796, %v794
    %v851 = vpack.c.b16 %v797, %v795
    %v852 = vpack.c.b16 %v800, %v798
    %v853 = vpack.c.b16 %v801, %v799
    %v854 = vpack.c.b16 %v804, %v802
    %v855 = vpack.c.b16 %v805, %v803
    %v856 = vpack.c.b16 %v808, %v806
    %v857 = vpack.c.b16 %v809, %v807
    %v858 = vpack.c.b16 %v812, %v810
    %v859 = vpack.c.b16 %v813, %v811
    %v860 = vpack.c.b16 %v816, %v814
    %v861 = vpack.c.b16 %v817, %v815
    %v862 = vpack.c.b16 %v820, %v818
    %v863 = vpack.c.b16 %v821, %v819
    %v864 = vpack.c.b16 %v824, %v822
    %v865 = vpack.c.b16 %v825, %v823
    %v866 = vpack.c.b16 %v828, %v826
    %v867 = vpack.c.b16 %v829, %v827
    %v868 = vpack.c.b16 %v832, %v830
    %v869 = vpack.c.b16 %v833, %v831
    %v870 = vpack.c.b16 %v836, %v834
    %v871 = vpack.c.b16 %v837, %v835
    %v872 = vpack.c.b16 %v840, %v838
    %v873 = vpack.c.b16 %v841, %v839
    %906 = vmatpush.bf16.msra.mxu0 %v545
    %907 = vmatpush.bf16.msra.mxu0 %v544
    %908 = vmatpush.bf16.msra.mxu0 %v543
    %909 = vmatpush.bf16.msra.mxu0 %v542
    %910 = vmatpush.bf16.msra.mxu0 %v541
    %911 = vmatpush.bf16.msra.mxu0 %v540
    %912 = vmatpush.bf16.msra.mxu0 %v539
    %913 = vmatpush.bf16.msra.mxu0 %v538
    %914 = vmatmul.bf16.gmra.mxu0 %v842
    %v915 = vpop.f32.mrf.mxu0
    %v916 = vadd.f32 %v589, %v915
    %v917 = vpop.f32.mrf.mxu0
    %v918 = vadd.f32 %v594, %v917
    %919 = vmatmul.bf16.gmra.mxu0 %v844
    %v920 = vpop.f32.mrf.mxu0
    %v921 = vadd.f32 %v599, %v920
    %v922 = vpop.f32.mrf.mxu0
    %v923 = vadd.f32 %v604, %v922
    %924 = vmatmul.bf16.gmra.mxu0 %v846
    %v925 = vpop.f32.mrf.mxu0
    %v926 = vadd.f32 %v609, %v925
    %v927 = vpop.f32.mrf.mxu0
    %v928 = vadd.f32 %v614, %v927
    %929 = vmatmul.bf16.gmra.mxu0 %v848
    %v930 = vpop.f32.mrf.mxu0
    %v931 = vadd.f32 %v619, %v930
    %v932 = vpop.f32.mrf.mxu0
    %v933 = vadd.f32 %v624, %v932
    %934 = vmatmul.bf16.gmra.mxu0 %v850
    %v935 = vpop.f32.mrf.mxu0
    %v936 = vadd.f32 %v629, %v935
    %v937 = vpop.f32.mrf.mxu0
    %v938 = vadd.f32 %v634, %v937
    %939 = vmatmul.bf16.gmra.mxu0 %v852
    %v940 = vpop.f32.mrf.mxu0
    %v941 = vadd.f32 %v639, %v940
    %v942 = vpop.f32.mrf.mxu0
    %v943 = vadd.f32 %v644, %v942
    %944 = vmatmul.bf16.gmra.mxu0 %v854
    %v945 = vpop.f32.mrf.mxu0
    %v946 = vadd.f32 %v649, %v945
    %v947 = vpop.f32.mrf.mxu0
    %v948 = vadd.f32 %v654, %v947
    %949 = vmatmul.bf16.gmra.mxu0 %v856
    %v950 = vpop.f32.mrf.mxu0
    %v951 = vadd.f32 %v659, %v950
    %v952 = vpop.f32.mrf.mxu0
    %v953 = vadd.f32 %v664, %v952
    %954 = vmatmul.bf16.gmra.mxu0 %v858
    %v955 = vpop.f32.mrf.mxu0
    %v956 = vadd.f32 %v669, %v955
    %v957 = vpop.f32.mrf.mxu0
    %v958 = vadd.f32 %v674, %v957
    %959 = vmatmul.bf16.gmra.mxu0 %v860
    %v960 = vpop.f32.mrf.mxu0
    %v961 = vadd.f32 %v679, %v960
    %v962 = vpop.f32.mrf.mxu0
    %v963 = vadd.f32 %v684, %v962
    %964 = vmatmul.bf16.gmra.mxu0 %v862
    %v965 = vpop.f32.mrf.mxu0
    %v966 = vadd.f32 %v689, %v965
    %v967 = vpop.f32.mrf.mxu0
    %v968 = vadd.f32 %v694, %v967
    %969 = vmatmul.bf16.gmra.mxu0 %v864
    %v970 = vpop.f32.mrf.mxu0
    %v971 = vadd.f32 %v699, %v970
    %v972 = vpop.f32.mrf.mxu0
    %v973 = vadd.f32 %v704, %v972
    %974 = vmatmul.bf16.gmra.mxu0 %v866
    %v975 = vpop.f32.mrf.mxu0
    %v976 = vadd.f32 %v709, %v975
    %v977 = vpop.f32.mrf.mxu0
    %v978 = vadd.f32 %v714, %v977
    %979 = vmatmul.bf16.gmra.mxu0 %v868
    %v980 = vpop.f32.mrf.mxu0
    %v981 = vadd.f32 %v719, %v980
    %v982 = vpop.f32.mrf.mxu0
    %v983 = vadd.f32 %v724, %v982
    %984 = vmatmul.bf16.gmra.mxu0 %v870
    %v985 = vpop.f32.mrf.mxu0
    %v986 = vadd.f32 %v729, %v985
    %v987 = vpop.f32.mrf.mxu0
    %v988 = vadd.f32 %v734, %v987
    %989 = vmatmul.bf16.gmra.mxu0 %v872
    %v990 = vpop.f32.mrf.mxu0
    %v991 = vadd.f32 %v739, %v990
    %v992 = vpop.f32.mrf.mxu0
    %v993 = vadd.f32 %v744, %v992
    %994 = vdwg.mxu0
    %995 = vmatpush.bf16.msra.mxu0 %v553
    %996 = vmatpush.bf16.msra.mxu0 %v552
    %997 = vmatpush.bf16.msra.mxu0 %v551
    %998 = vmatpush.bf16.msra.mxu0 %v550
    %999 = vmatpush.bf16.msra.mxu0 %v549
    %1000 = vmatpush.bf16.msra.mxu0 %v548
    %1001 = vmatpush.bf16.msra.mxu0 %v547
    %1002 = vmatpush.bf16.msra.mxu0 %v546
    %1003 = vmatmul.bf16.gmra.mxu0 %v843
    %v1004 = vpop.f32.mrf.mxu0
    %v1005 = vadd.f32 %v916, %v1004
    %v1006 = vpop.f32.mrf.mxu0
    %v1007 = vadd.f32 %v918, %v1006
    %1008 = vmatmul.bf16.gmra.mxu0 %v845
    %v1009 = vpop.f32.mrf.mxu0
    %v1010 = vadd.f32 %v921, %v1009
    %v1011 = vpop.f32.mrf.mxu0
    %v1012 = vadd.f32 %v923, %v1011
    %1013 = vmatmul.bf16.gmra.mxu0 %v847
    %v1014 = vpop.f32.mrf.mxu0
    %v1015 = vadd.f32 %v926, %v1014
    %v1016 = vpop.f32.mrf.mxu0
    %v1017 = vadd.f32 %v928, %v1016
    %1018 = vmatmul.bf16.gmra.mxu0 %v849
    %v1019 = vpop.f32.mrf.mxu0
    %v1020 = vadd.f32 %v931, %v1019
    %v1021 = vpop.f32.mrf.mxu0
    %v1022 = vadd.f32 %v933, %v1021
    %1023 = vmatmul.bf16.gmra.mxu0 %v851
    %v1024 = vpop.f32.mrf.mxu0
    %v1025 = vadd.f32 %v936, %v1024
    %v1026 = vpop.f32.mrf.mxu0
    %v1027 = vadd.f32 %v938, %v1026
    %1028 = vmatmul.bf16.gmra.mxu0 %v853
    %v1029 = vpop.f32.mrf.mxu0
    %v1030 = vadd.f32 %v941, %v1029
    %v1031 = vpop.f32.mrf.mxu0
    %v1032 = vadd.f32 %v943, %v1031
    %1033 = vmatmul.bf16.gmra.mxu0 %v855
    %v1034 = vpop.f32.mrf.mxu0
    %v1035 = vadd.f32 %v946, %v1034
    %v1036 = vpop.f32.mrf.mxu0
    %v1037 = vadd.f32 %v948, %v1036
    %1038 = vmatmul.bf16.gmra.mxu0 %v857
    %v1039 = vpop.f32.mrf.mxu0
    %v1040 = vadd.f32 %v951, %v1039
    %v1041 = vpop.f32.mrf.mxu0
    %v1042 = vadd.f32 %v953, %v1041
    %1043 = vmatmul.bf16.gmra.mxu0 %v859
    %v1044 = vpop.f32.mrf.mxu0
    %v1045 = vadd.f32 %v956, %v1044
    %v1046 = vpop.f32.mrf.mxu0
    %v1047 = vadd.f32 %v958, %v1046
    %1048 = vmatmul.bf16.gmra.mxu0 %v861
    %v1049 = vpop.f32.mrf.mxu0
    %v1050 = vadd.f32 %v961, %v1049
    %v1051 = vpop.f32.mrf.mxu0
    %v1052 = vadd.f32 %v963, %v1051
    %1053 = vmatmul.bf16.gmra.mxu0 %v863
    %v1054 = vpop.f32.mrf.mxu0
    %v1055 = vadd.f32 %v966, %v1054
    %v1056 = vpop.f32.mrf.mxu0
    %v1057 = vadd.f32 %v968, %v1056
    %1058 = vmatmul.bf16.gmra.mxu0 %v865
    %v1059 = vpop.f32.mrf.mxu0
    %v1060 = vadd.f32 %v971, %v1059
    %v1061 = vpop.f32.mrf.mxu0
    %v1062 = vadd.f32 %v973, %v1061
    %1063 = vmatmul.bf16.gmra.mxu0 %v867
    %v1064 = vpop.f32.mrf.mxu0
    %v1065 = vadd.f32 %v976, %v1064
    %v1066 = vpop.f32.mrf.mxu0
    %v1067 = vadd.f32 %v978, %v1066
    %1068 = vmatmul.bf16.gmra.mxu0 %v869
    %v1069 = vpop.f32.mrf.mxu0
    %v1070 = vadd.f32 %v981, %v1069
    %v1071 = vpop.f32.mrf.mxu0
    %v1072 = vadd.f32 %v983, %v1071
    %1073 = vmatmul.bf16.gmra.mxu0 %v871
    %v1074 = vpop.f32.mrf.mxu0
    %v1075 = vadd.f32 %v986, %v1074
    %v1076 = vpop.f32.mrf.mxu0
    %v1077 = vadd.f32 %v988, %v1076
    %1078 = vmatmul.bf16.gmra.mxu0 %v873
    %v1079 = vpop.f32.mrf.mxu0
    %v1080 = vadd.f32 %v991, %v1079
    %v1081 = vpop.f32.mrf.mxu0
    %v1082 = vadd.f32 %v993, %v1081
    %1083 = vdwg.mxu0
    %v1084 = vmax.f32 %v1005, 0.0
    %v1085 = vmax.f32 %v1007, 0.0
    %v1086 = vmax.f32 %v1010, 0.0
    %v1087 = vmax.f32 %v1012, 0.0
    %v1088 = vmax.f32 %v1015, 0.0
    %v1089 = vmax.f32 %v1017, 0.0
    %v1090 = vmax.f32 %v1020, 0.0
    %v1091 = vmax.f32 %v1022, 0.0
    %v1092 = vmax.f32 %v1025, 0.0
    %v1093 = vmax.f32 %v1027, 0.0
    %v1094 = vmax.f32 %v1030, 0.0
    %v1095 = vmax.f32 %v1032, 0.0
    %v1096 = vmax.f32 %v1035, 0.0
    %v1097 = vmax.f32 %v1037, 0.0
    %v1098 = vmax.f32 %v1040, 0.0
    %v1099 = vmax.f32 %v1042, 0.0
    %v1100 = vmax.f32 %v1045, 0.0
    %v1101 = vmax.f32 %v1047, 0.0
    %v1102 = vmax.f32 %v1050, 0.0
    %v1103 = vmax.f32 %v1052, 0.0
    %v1104 = vmax.f32 %v1055, 0.0
    %v1105 = vmax.f32 %v1057, 0.0
    %v1106 = vmax.f32 %v1060, 0.0
    %v1107 = vmax.f32 %v1062, 0.0
    %v1108 = vmax.f32 %v1065, 0.0
    %v1109 = vmax.f32 %v1067, 0.0
    %v1110 = vmax.f32 %v1070, 0.0
    %v1111 = vmax.f32 %v1072, 0.0
    %v1112 = vmax.f32 %v1075, 0.0
    %v1113 = vmax.f32 %v1077, 0.0
    %v1114 = vmax.f32 %v1080, 0.0
    %v1115 = vmax.f32 %v1082, 0.0
    %v1116 = vld [vmem:[%s5] sm:$0xff]
    %v1117 = vld [vmem:[%s5 + $0x8] sm:$0xff]
    %v1118 = vld [vmem:[%s5 + $0x10] sm:$0xff]
    %v1119 = vld [vmem:[%s5 + $0x18] sm:$0xff]
    %v1120 = vld [vmem:[%s5 + $0x20] sm:$0xff]
    %v1121 = vld [vmem:[%s5 + $0x28] sm:$0xff]
    %v1122 = vld [vmem:[%s5 + $0x30] sm:$0xff]
    %v1123 = vld [vmem:[%s5 + $0x38] sm:$0xff]
    %v1124 = vld [vmem:[%s5 + $0x40] sm:$0xff]
    %v1125 = vld [vmem:[%s5 + $0x48] sm:$0xff]
    %v1126 = vld [vmem:[%s5 + $0x50] sm:$0xff]
    %v1127 = vld [vmem:[%s5 + $0x58] sm:$0xff]
    %v1128 = vld [vmem:[%s5 + $0x60] sm:$0xff]
    %v1129 = vld [vmem:[%s5 + $0x68] sm:$0xff]
    %v1130 = vld [vmem:[%s5 + $0x70] sm:$0xff]
    %v1131 = vld [vmem:[%s5 + $0x78] sm:$0xff]
    %v1132 = vld [vmem:[%s5 + $0x80] sm:$0xff]
    %v1133 = vld [vmem:[%s5 + $0x88] sm:$0xff]
    %v1134 = vld [vmem:[%s5 + $0x90] sm:$0xff]
    %v1135 = vld [vmem:[%s5 + $0x98] sm:$0xff]
    %v1136 = vld [vmem:[%s5 + $0xa0] sm:$0xff]
    %v1137 = vld [vmem:[%s5 + $0xa8] sm:$0xff]
    %v1138 = vld [vmem:[%s5 + $0xb0] sm:$0xff]
    %v1139 = vld [vmem:[%s5 + $0xb8] sm:$0xff]
    %v1140 = vld [vmem:[%s5 + $0xc0] sm:$0xff]
    %v1141 = vld [vmem:[%s5 + $0xc8] sm:$0xff]
    %v1142 = vld [vmem:[%s5 + $0xd0] sm:$0xff]
    %v1143 = vld [vmem:[%s5 + $0xd8] sm:$0xff]
    %v1144 = vld [vmem:[%s5 + $0xe0] sm:$0xff]
    %v1145 = vld [vmem:[%s5 + $0xe8] sm:$0xff]
    %v1146 = vld [vmem:[%s5 + $0xf0] sm:$0xff]
    %v1147 = vld [vmem:[%s5 + $0xf8] sm:$0xff]
    %1149 = vset.pattern.permute.xlu0 0
    %1150 = vperm.xlu0 %1149, %v1116
    %v1151 = vpop.permute.xlu0 %1150
    %1154 = vset.pattern.permute.xlu0 0
    %1155 = vperm.xlu0 %1154, %v1117
    %v1156 = vpop.permute.xlu0 %1155
    %1159 = vset.pattern.permute.xlu0 0
    %1160 = vperm.xlu0 %1159, %v1118
    %v1161 = vpop.permute.xlu0 %1160
    %1164 = vset.pattern.permute.xlu0 0
    %1165 = vperm.xlu0 %1164, %v1119
    %v1166 = vpop.permute.xlu0 %1165
    %1169 = vset.pattern.permute.xlu0 0
    %1170 = vperm.xlu0 %1169, %v1120
    %v1171 = vpop.permute.xlu0 %1170
    %1174 = vset.pattern.permute.xlu0 0
    %1175 = vperm.xlu0 %1174, %v1121
    %v1176 = vpop.permute.xlu0 %1175
    %1179 = vset.pattern.permute.xlu0 0
    %1180 = vperm.xlu0 %1179, %v1122
    %v1181 = vpop.permute.xlu0 %1180
    %1184 = vset.pattern.permute.xlu0 0
    %1185 = vperm.xlu0 %1184, %v1123
    %v1186 = vpop.permute.xlu0 %1185
    %1189 = vset.pattern.permute.xlu0 0
    %1190 = vperm.xlu0 %1189, %v1124
    %v1191 = vpop.permute.xlu0 %1190
    %1194 = vset.pattern.permute.xlu0 0
    %1195 = vperm.xlu0 %1194, %v1125
    %v1196 = vpop.permute.xlu0 %1195
    %1199 = vset.pattern.permute.xlu0 0
    %1200 = vperm.xlu0 %1199, %v1126
    %v1201 = vpop.permute.xlu0 %1200
    %1204 = vset.pattern.permute.xlu0 0
    %1205 = vperm.xlu0 %1204, %v1127
    %v1206 = vpop.permute.xlu0 %1205
    %1209 = vset.pattern.permute.xlu0 0
    %1210 = vperm.xlu0 %1209, %v1128
    %v1211 = vpop.permute.xlu0 %1210
    %1214 = vset.pattern.permute.xlu0 0
    %1215 = vperm.xlu0 %1214, %v1129
    %v1216 = vpop.permute.xlu0 %1215
    %1219 = vset.pattern.permute.xlu0 0
    %1220 = vperm.xlu0 %1219, %v1130
    %v1221 = vpop.permute.xlu0 %1220
    %1224 = vset.pattern.permute.xlu0 0
    %1225 = vperm.xlu0 %1224, %v1131
    %v1226 = vpop.permute.xlu0 %1225
    %1229 = vset.pattern.permute.xlu0 0
    %1230 = vperm.xlu0 %1229, %v1132
    %v1231 = vpop.permute.xlu0 %1230
    %1234 = vset.pattern.permute.xlu0 0
    %1235 = vperm.xlu0 %1234, %v1133
    %v1236 = vpop.permute.xlu0 %1235
    %1239 = vset.pattern.permute.xlu0 0
    %1240 = vperm.xlu0 %1239, %v1134
    %v1241 = vpop.permute.xlu0 %1240
    %1244 = vset.pattern.permute.xlu0 0
    %1245 = vperm.xlu0 %1244, %v1135
    %v1246 = vpop.permute.xlu0 %1245
    %1249 = vset.pattern.permute.xlu0 0
    %1250 = vperm.xlu0 %1249, %v1136
    %v1251 = vpop.permute.xlu0 %1250
    %1254 = vset.pattern.permute.xlu0 0
    %1255 = vperm.xlu0 %1254, %v1137
    %v1256 = vpop.permute.xlu0 %1255
    %1259 = vset.pattern.permute.xlu0 0
    %1260 = vperm.xlu0 %1259, %v1138
    %v1261 = vpop.permute.xlu0 %1260
    %1264 = vset.pattern.permute.xlu0 0
    %1265 = vperm.xlu0 %1264, %v1139
    %v1266 = vpop.permute.xlu0 %1265
    %1269 = vset.pattern.permute.xlu0 0
    %1270 = vperm.xlu0 %1269, %v1140
    %v1271 = vpop.permute.xlu0 %1270
    %1274 = vset.pattern.permute.xlu0 0
    %1275 = vperm.xlu0 %1274, %v1141
    %v1276 = vpop.permute.xlu0 %1275
    %1279 = vset.pattern.permute.xlu0 0
    %1280 = vperm.xlu0 %1279, %v1142
    %v1281 = vpop.permute.xlu0 %1280
    %1284 = vset.pattern.permute.xlu0 0
    %1285 = vperm.xlu0 %1284, %v1143
    %v1286 = vpop.permute.xlu0 %1285
    %1289 = vset.pattern.permute.xlu0 0
    %1290 = vperm.xlu0 %1289, %v1144
    %v1291 = vpop.permute.xlu0 %1290
    %1294 = vset.pattern.permute.xlu0 0
    %1295 = vperm.xlu0 %1294, %v1145
    %v1296 = vpop.permute.xlu0 %1295
    %1299 = vset.pattern.permute.xlu0 0
    %1300 = vperm.xlu0 %1299, %v1146
    %v1301 = vpop.permute.xlu0 %1300
    %1304 = vset.pattern.permute.xlu0 0
    %1305 = vperm.xlu0 %1304, %v1147
    %v1306 = vpop.permute.xlu0 %1305
    %v1308 = vmul.f32 %v1084, %v1151
    %v1309 = vmul.f32 %v1085, %v1156
    %v1310 = vmul.f32 %v1086, %v1161
    %v1311 = vmul.f32 %v1087, %v1166
    %v1312 = vmul.f32 %v1088, %v1171
    %v1313 = vmul.f32 %v1089, %v1176
    %v1314 = vmul.f32 %v1090, %v1181
    %v1315 = vmul.f32 %v1091, %v1186
    %v1316 = vmul.f32 %v1092, %v1191
    %v1317 = vmul.f32 %v1093, %v1196
    %v1318 = vmul.f32 %v1094, %v1201
    %v1319 = vmul.f32 %v1095, %v1206
    %v1320 = vmul.f32 %v1096, %v1211
    %v1321 = vmul.f32 %v1097, %v1216
    %v1322 = vmul.f32 %v1098, %v1221
    %v1323 = vmul.f32 %v1099, %v1226
    %v1324 = vmul.f32 %v1100, %v1231
    %v1325 = vmul.f32 %v1101, %v1236
    %v1326 = vmul.f32 %v1102, %v1241
    %v1327 = vmul.f32 %v1103, %v1246
    %v1328 = vmul.f32 %v1104, %v1251
    %v1329 = vmul.f32 %v1105, %v1256
    %v1330 = vmul.f32 %v1106, %v1261
    %v1331 = vmul.f32 %v1107, %v1266
    %v1332 = vmul.f32 %v1108, %v1271
    %v1333 = vmul.f32 %v1109, %v1276
    %v1334 = vmul.f32 %v1110, %v1281
    %v1335 = vmul.f32 %v1111, %v1286
    %v1336 = vmul.f32 %v1112, %v1291
    %v1337 = vmul.f32 %v1113, %v1296
    %v1338 = vmul.f32 %v1114, %v1301
    %v1339 = vmul.f32 %v1115, %v1306
    %vm1340 = vcmask 64512
    %v1341 = vsel %vm1340, %v1308, 0.0
    %v1342 = vsel %vm1340, %v1309, 0.0
    %v1343 = vadd.f32 %v1341, %v1342
    %v1344 = vsel %vm1340, %v1310, 0.0
    %v1345 = vadd.f32 %v1343, %v1344
    %v1346 = vsel %vm1340, %v1311, 0.0
    %v1347 = vadd.f32 %v1345, %v1346
    %v1348 = vsel %vm1340, %v1312, 0.0
    %v1349 = vadd.f32 %v1347, %v1348
    %v1350 = vsel %vm1340, %v1313, 0.0
    %v1351 = vadd.f32 %v1349, %v1350
    %v1352 = vsel %vm1340, %v1314, 0.0
    %v1353 = vadd.f32 %v1351, %v1352
    %v1354 = vsel %vm1340, %v1315, 0.0
    %v1355 = vadd.f32 %v1353, %v1354
    %v1356 = vsel %vm1340, %v1316, 0.0
    %v1357 = vadd.f32 %v1355, %v1356
    %v1358 = vsel %vm1340, %v1317, 0.0
    %v1359 = vadd.f32 %v1357, %v1358
    %v1360 = vsel %vm1340, %v1318, 0.0
    %v1361 = vadd.f32 %v1359, %v1360
    %v1362 = vsel %vm1340, %v1319, 0.0
    %v1363 = vadd.f32 %v1361, %v1362
    %v1364 = vsel %vm1340, %v1320, 0.0
    %v1365 = vadd.f32 %v1363, %v1364
    %v1366 = vsel %vm1340, %v1321, 0.0
    %v1367 = vadd.f32 %v1365, %v1366
    %v1368 = vsel %vm1340, %v1322, 0.0
    %v1369 = vadd.f32 %v1367, %v1368
    %v1370 = vsel %vm1340, %v1323, 0.0
    %v1371 = vadd.f32 %v1369, %v1370
    %v1372 = vsel %vm1340, %v1324, 0.0
    %v1373 = vadd.f32 %v1371, %v1372
    %v1374 = vsel %vm1340, %v1325, 0.0
    %v1375 = vadd.f32 %v1373, %v1374
    %v1376 = vsel %vm1340, %v1326, 0.0
    %v1377 = vadd.f32 %v1375, %v1376
    %v1378 = vsel %vm1340, %v1327, 0.0
    %v1379 = vadd.f32 %v1377, %v1378
    %v1380 = vsel %vm1340, %v1328, 0.0
    %v1381 = vadd.f32 %v1379, %v1380
    %v1382 = vsel %vm1340, %v1329, 0.0
    %v1383 = vadd.f32 %v1381, %v1382
    %v1384 = vsel %vm1340, %v1330, 0.0
    %v1385 = vadd.f32 %v1383, %v1384
    %v1386 = vsel %vm1340, %v1331, 0.0
    %v1387 = vadd.f32 %v1385, %v1386
    %v1388 = vsel %vm1340, %v1332, 0.0
    %v1389 = vadd.f32 %v1387, %v1388
    %v1390 = vsel %vm1340, %v1333, 0.0
    %v1391 = vadd.f32 %v1389, %v1390
    %v1392 = vsel %vm1340, %v1334, 0.0
    %v1393 = vadd.f32 %v1391, %v1392
    %v1394 = vsel %vm1340, %v1335, 0.0
    %v1395 = vadd.f32 %v1393, %v1394
    %v1396 = vsel %vm1340, %v1336, 0.0
    %v1397 = vadd.f32 %v1395, %v1396
    %v1398 = vsel %vm1340, %v1337, 0.0
    %v1399 = vadd.f32 %v1397, %v1398
    %v1400 = vsel %vm1340, %v1338, 0.0
    %v1401 = vadd.f32 %v1399, %v1400
    %v1402 = vsel %vm1340, %v1339, 0.0
    %v1403 = vadd.f32 %v1401, %v1402
    %v1404 = vrot.slane %v1403, 4
    %v1405 = vadd.f32 %v1403, %v1404
    %v1406 = vrot.slane %v1405, 2
    %v1407 = vadd.f32 %v1405, %v1406
    %v1408 = vrot.slane %v1407, 1
    %v1409 = vadd.f32 %v1407, %v1408
    %s1410 = sld [smem:[#allocation2]]
    %v1411 = vstv %s1410
    %v1412 = vadd.f32 %v1409, %v1411
    %vm1413 = vcmask 57344
    %1414 = vst.msk [vmem:[#allocation3] sm:$0x1] %vm1413, %v1412
    // Predicated region
    $region30: #{tpu_custom_call.1} parent=1 // pred_check
      _
    $region31: #{tpu_custom_call.1} parent=1 // pred_check_branch
      %1416 = sbr.rel (0) target = $region33
    $region32: #{tpu_custom_call.1} parent=1 // pred_region
      %1418 = vsyncadd [#allocation4], 0
      %s1420 = sshll.u32 [#allocation3], 4
      %s1421 = int_to_ptr.vmem [resolvable:$true] %s1420
      %s1422 = sshll.u32 %s7, 4
      %s1423 = int_to_ptr.hbm [resolvable:$true] %s1422
      %1425 = dma.vmem_to_hbm [thread:$0]  %s1421, 16, %s1423, [#allocation4]
    $region33: #{tpu_custom_call.1} parent=1 // pred_fallthru
      _
    // Predicated region
    $region34: #{tpu_custom_call.1} parent=1 // pred_check
      _
    $region35: #{tpu_custom_call.1} parent=1 // pred_check_branch
      %1427 = sbr.rel (0) target = $region37
    $region36: #{tpu_custom_call.1} parent=1 // pred_region
      %1429 = dma.done [#allocation4], 16
    $region37: #{tpu_custom_call.1} parent=1 // pred_fallthru
      _
    %1430 = vsyncpa [#allocation4], 1

</llo_original>
